<compile_context>
chip_gen: v7x
topology: tpu7x:2x2x1
jax: 0.10.0
libtpu: 0.0.40
codegen_flags: <defaults>
</compile_context>

<pallas_src>
import jax
import jax.numpy as jnp
from jax.experimental import pallas as pl
from jax.experimental.pallas import tpu as pltpu  # noqa: F401  (kept for TPU-specific tuning hooks)

# ----------------------------- problem sizes -------------------------------
BATCH = 2
SEQ_LEN = 8
D_MODEL = 32
NUM_HEADS = 4
FF_HIDDEN = 64
HEAD_DIM = D_MODEL // NUM_HEADS
LN_EPS = 1e-5
BS = BATCH * SEQ_LEN            # 16 joint (batch*seq) rows
HBS = NUM_HEADS * BS            # 64 = packed (head, key) axis


def _log2(n):
    assert n > 0 and (n & (n - 1)) == 0, "sizes must be powers of two for shift-based masks"
    return n.bit_length() - 1


LOG2_SEQ = _log2(SEQ_LEN)       # batch id of a query/key row = idx >> LOG2_SEQ
LOG2_HD = _log2(HEAD_DIM)       # head of a feature column    = col >> LOG2_HD
LOG2_BS = _log2(BS)             # head of a packed K/V row    = row >> LOG2_BS


# ------------------------------ Pallas kernel ------------------------------
def _layer_norm(x, gamma, beta):
    mean = jnp.mean(x, axis=-1, keepdims=True)
    var = jnp.mean((x - mean) ** 2, axis=-1, keepdims=True)
    return (x - mean) * jax.lax.rsqrt(var + LN_EPS) * gamma + beta


def encoder_block_kernel(x_ref, w_ref, vecs_ref, o_ref):
    D, F, H = D_MODEL, FF_HIDDEN, NUM_HEADS

    x = x_ref[...]                                    # (BS, D)  f32
    vecs = vecs_ref[...]                              # (8, 3D)  f32 packed vectors

    bqkv = vecs[0:1, :]                               # (1, 3D)  (attn scale folded into bq)
    bo = vecs[1:2, :D]
    g1 = vecs[2:3, :D]
    be1 = vecs[3:4, :D]
    b1 = vecs[4:5, :F]
    b2 = vecs[5:6, :D]
    g2 = vecs[6:7, :D]
    be2 = vecs[7:8, :D]

    # Static sub-windows of the single bf16 weight slab (row offsets/lengths
    # are multiples of the bf16 sublane tile -> plain window loads).
    wqkv = w_ref[0:D, :]                              # (D, 3D)
    wo = w_ref[D:2 * D, 0:D]                          # (D, D)
    w1 = w_ref[2 * D:3 * D, 0:F]                      # (D, F)
    w2 = w_ref[3 * D:3 * D + F, 0:D]                  # (F, D)

    # ---- fused QKV projection: one MXU call, bf16 inputs, f32 accumulation
    xb = x.astype(jnp.bfloat16)
    qkv = jnp.dot(xb, wqkv, preferred_element_type=jnp.float32) + bqkv    # (BS, 3D)
    q = qkv[:, 0:D]
    k = qkv[:, D:2 * D]
    v = qkv[:, 2 * D:3 * D]

    # ---- constant masks (index-only, built once; no per-head work) ----
    # blkmask[r, c] = 1 iff packed row r = h*BS + s and feature column c belong
    # to the same head h. Used to block-diagonalise K/V AND to produce the
    # per-head softmax denominator with a matmul.
    r_id = jax.lax.broadcasted_iota(jnp.int32, (HBS, D), 0)
    c_id = jax.lax.broadcasted_iota(jnp.int32, (HBS, D), 1)
    blkmask = (jnp.right_shift(r_id, LOG2_BS)
               == jnp.right_shift(c_id, LOG2_HD)).astype(jnp.float32)     # (HBS, D)
    blkmask_b = blkmask.astype(jnp.bfloat16)

    # addmask[q, h*BS+s] = 0 if query q and key s are from the same batch
    # element, else -inf (block-diagonal attention over the joint batch axis).
    q_id = jax.lax.broadcasted_iota(jnp.int32, (BS, HBS), 0)
    s_id = jax.lax.broadcasted_iota(jnp.int32, (BS, HBS), 1)
    same_batch = (jnp.right_shift(q_id, LOG2_SEQ)
                  == jnp.right_shift(jnp.bitwise_and(s_id, BS - 1), LOG2_SEQ))
    addmask = jnp.where(same_batch, 0.0, -jnp.inf)                        # (BS, HBS)

    # ---- block-diagonal packed K / V: all heads in TWO MXU calls ----
    k_blk = (jnp.concatenate([k] * H, axis=0) * blkmask).astype(jnp.bfloat16)   # (HBS, D)
    v_blk = (jnp.concatenate([v] * H, axis=0) * blkmask).astype(jnp.bfloat16)   # (HBS, D)

    # Scores: contraction on the LAST dim of both operands -> K consumed
    # untransposed by the MXU (no XLU transpose, no lane slicing).
    s = jax.lax.dot_general(q.astype(jnp.bfloat16), k_blk,
                            (((1,), (1,)), ((), ())),
                            preferred_element_type=jnp.float32)           # (BS, HBS)
    s = s + addmask
    # Global row max is a valid softmax shift for every 16-wide head block of
    # that row (each block always contains >=1 finite same-batch entry).
    s = s - jnp.max(s, axis=-1, keepdims=True)
    e = jnp.exp(s)                                                        # masked entries -> exactly 0
    eb = e.astype(jnp.bfloat16)

    ctx_un = jnp.dot(eb, v_blk, preferred_element_type=jnp.float32)       # (BS, D), head-concatenated
    denom = jnp.dot(eb, blkmask_b, preferred_element_type=jnp.float32)    # (BS, D), per-head block sums
    ctx = ctx_un * pl.reciprocal(denom, approx=False)

    # ---- single fused output projection ----
    attn = jnp.dot(ctx.astype(jnp.bfloat16), wo,
                   preferred_element_type=jnp.float32) + bo

    # ---- AddNorm 1 (dropout == identity at inference) ----
    x1 = _layer_norm(x + attn, g1, be1)

    # ---- FeedForward: Linear -> ReLU -> (dropout) -> Linear ----
    h1 = jnp.maximum(jnp.dot(x1.astype(jnp.bfloat16), w1,
                             preferred_element_type=jnp.float32) + b1, 0.0)
    ffn = jnp.dot(h1.astype(jnp.bfloat16), w2,
                  preferred_element_type=jnp.float32) + b2

    # ---- AddNorm 2 ----
    o_ref[...] = _layer_norm(x1 + ffn, g2, be2)


# -------------------------------- wrapper ----------------------------------
def pack_params(params):
    """One-time parameter packing (hoisted out of the per-call path).

    Returns:
      w_slab: (3D+F, 3D) bf16 rows = [wq*scale|wk|wv ; wo(pad) ; w1(pad) ; w2(pad)]
      vecs:   (8, 3D) f32 packed bias / LayerNorm vectors.
    """
    D = D_MODEL
    scale = 1.0 / (HEAD_DIM ** 0.5)

    wqkv = jnp.concatenate([params["wq"] * scale, params["wk"], params["wv"]], axis=1)

    def pad_cols(w):
        return jnp.pad(w, ((0, 0), (0, 3 * D - w.shape[1])))

    w_slab = jnp.concatenate(
        [wqkv, pad_cols(params["wo"]), pad_cols(params["w1"]), pad_cols(params["w2"])],
        axis=0).astype(jnp.bfloat16)                                      # (160, 96)

    bqkv = jnp.concatenate([params["bq"] * scale, params["bk"], params["bv"]])

    def row(vv):
        return jnp.pad(vv, (0, 3 * D - vv.shape[0]))[None, :]

    vecs = jnp.concatenate([
        bqkv[None, :],
        row(params["bo"]), row(params["g1"]), row(params["be1"]),
        row(params["b1"]), row(params["b2"]), row(params["g2"]), row(params["be2"]),
    ], axis=0).astype(jnp.float32)                                        # (8, 96)

    return w_slab, vecs


@jax.jit
def encoder_block(x, w_slab, vecs):
    """x: (B, S, D) float32; w_slab / vecs: outputs of pack_params()."""
    B, S, D = x.shape
    out2d = pl.pallas_call(
        encoder_block_kernel,
        out_shape=jax.ShapeDtypeStruct((B * S, D), jnp.float32),
        # no grid: single invocation, all operands resident in VMEM (~35 KB)
    )(x.reshape(B * S, D), w_slab, vecs)
    return out2d.reshape(B, S, D)


# ----------------------------- pure-JAX reference --------------------------
def reference(x, p):
    B, S, D = x.shape
    H, hd = NUM_HEADS, HEAD_DIM

    q = x @ p["wq"] + p["bq"]
    k = x @ p["wk"] + p["bk"]
    v = x @ p["wv"] + p["bv"]
    q = q.reshape(B, S, H, hd).transpose(0, 2, 1, 3)
    k = k.reshape(B, S, H, hd).transpose(0, 2, 1, 3)
    v = v.reshape(B, S, H, hd).transpose(0, 2, 1, 3)
    s = jnp.einsum("bhqd,bhkd->bhqk", q, k) / jnp.sqrt(float(hd))
    a = jax.nn.softmax(s, axis=-1)
    o = jnp.einsum("bhqk,bhkd->bhqd", a, v).transpose(0, 2, 1, 3).reshape(B, S, D)
    attn = o @ p["wo"] + p["bo"]

    def ln(y, g, b):
        m = jnp.mean(y, -1, keepdims=True)
        var = jnp.mean((y - m) ** 2, -1, keepdims=True)
        return (y - m) * jax.lax.rsqrt(var + LN_EPS) * g + b

    x1 = ln(x + attn, p["g1"], p["be1"])
    ffn = jnp.maximum(x1 @ p["w1"] + p["b1"], 0.0) @ p["w2"] + p["b2"]
    return ln(x1 + ffn, p["g2"], p["be2"])


# ---------------------------------- main ------------------------------------
if __name__ == "__main__":
    key = jax.random.PRNGKey(0)
    ks = jax.random.split(key, 16)
    D, F = D_MODEL, FF_HIDDEN

    def w(k, shape, scale=0.05):
        return (scale * jax.random.normal(k, shape)).astype(jnp.float32)

    params = {
        "wq": w(ks[0], (D, D)), "bq": w(ks[1], (D,)),
        "wk": w(ks[2], (D, D)), "bk": w(ks[3], (D,)),
        "wv": w(ks[4], (D, D)), "bv": w(ks[5], (D,)),
        "wo": w(ks[6], (D, D)), "bo": w(ks[7], (D,)),
        "g1": jnp.ones((D,), jnp.float32), "be1": jnp.zeros((D,), jnp.float32),
        "w1": w(ks[8], (D, F)), "b1": w(ks[9], (F,)),
        "w2": w(ks[10], (F, D)), "b2": w(ks[11], (D,)),
        "g2": jnp.ones((D,), jnp.float32), "be2": jnp.zeros((D,), jnp.float32),
    }

    x = jax.random.normal(ks[12], (BATCH, SEQ_LEN, D_MODEL), dtype=jnp.float32)

    # one-time packing (init-time, not in the per-call path)
    w_slab, vecs = pack_params(params)

    out = jax.block_until_ready(encoder_block(x, w_slab, vecs))
    ref = jax.block_until_ready(reference(x, params))

    assert out.shape == (BATCH, SEQ_LEN, D_MODEL)
    # tolerance accommodates bf16 MXU inputs (f32 accumulation); elementwise,
    # softmax and LayerNorm math stays f32, so error stays ~1e-3 level.
    assert jnp.allclose(out, ref, atol=1e-2, rtol=1e-2), \
        f"max abs diff {jnp.max(jnp.abs(out - ref))}"
    print("KERNEL_OK")
</pallas_src>

<mosaic_0001>
module attributes {stable_mosaic.version = 11 : i64} {
  func.func @encoder_block_kernel(%arg0: memref<16x32xf32, #tpu.memory_space<vmem>>, %arg1: memref<160x96xbf16, #tpu.memory_space<vmem>>, %arg2: memref<8x96xf32, #tpu.memory_space<vmem>>, %arg3: memref<16x32xf32, #tpu.memory_space<vmem>>) attributes {dimension_semantics = [], scalar_prefetch = 0 : i64, scratch_operands = 0 : i64, tpu.core_type = #tpu.core_type<tc>} {
    %c0 = arith.constant 0 : index
    %c0_0 = arith.constant 0 : index
    %0 = vector.load %arg0[%c0, %c0_0] : memref<16x32xf32, #tpu.memory_space<vmem>>, vector<16x32xf32>
    %c0_1 = arith.constant 0 : index
    %c0_2 = arith.constant 0 : index
    %1 = vector.load %arg2[%c0_1, %c0_2] : memref<8x96xf32, #tpu.memory_space<vmem>>, vector<8x96xf32>
    %2 = vector.extract_strided_slice %1 {offsets = [0, 0], sizes = [1, 96], strides = [1, 1]} : vector<8x96xf32> to vector<1x96xf32>
    %3 = vector.extract_strided_slice %1 {offsets = [1, 0], sizes = [1, 32], strides = [1, 1]} : vector<8x96xf32> to vector<1x32xf32>
    %4 = vector.extract_strided_slice %1 {offsets = [2, 0], sizes = [1, 32], strides = [1, 1]} : vector<8x96xf32> to vector<1x32xf32>
    %5 = vector.extract_strided_slice %1 {offsets = [3, 0], sizes = [1, 32], strides = [1, 1]} : vector<8x96xf32> to vector<1x32xf32>
    %6 = vector.extract_strided_slice %1 {offsets = [4, 0], sizes = [1, 64], strides = [1, 1]} : vector<8x96xf32> to vector<1x64xf32>
    %7 = vector.extract_strided_slice %1 {offsets = [5, 0], sizes = [1, 32], strides = [1, 1]} : vector<8x96xf32> to vector<1x32xf32>
    %8 = vector.extract_strided_slice %1 {offsets = [6, 0], sizes = [1, 32], strides = [1, 1]} : vector<8x96xf32> to vector<1x32xf32>
    %9 = vector.extract_strided_slice %1 {offsets = [7, 0], sizes = [1, 32], strides = [1, 1]} : vector<8x96xf32> to vector<1x32xf32>
    %c0_3 = arith.constant 0 : index
    %c0_4 = arith.constant 0 : index
    %10 = vector.load %arg1[%c0_3, %c0_4] : memref<160x96xbf16, #tpu.memory_space<vmem>>, vector<32x96xbf16>
    %c32 = arith.constant 32 : index
    %c0_5 = arith.constant 0 : index
    %11 = vector.load %arg1[%c32, %c0_5] : memref<160x96xbf16, #tpu.memory_space<vmem>>, vector<32x32xbf16>
    %c64 = arith.constant 64 : index
    %c0_6 = arith.constant 0 : index
    %12 = vector.load %arg1[%c64, %c0_6] : memref<160x96xbf16, #tpu.memory_space<vmem>>, vector<32x64xbf16>
    %c96 = arith.constant 96 : index
    %c0_7 = arith.constant 0 : index
    %13 = vector.load %arg1[%c96, %c0_7] : memref<160x96xbf16, #tpu.memory_space<vmem>>, vector<64x32xbf16>
    %14 = arith.truncf %0 : vector<16x32xf32> to vector<16x32xbf16>
    %cst = arith.constant dense<0.000000e+00> : vector<16x96xf32>
    %15 = tpu.matmul %14, %10, %cst {dimension_numbers = #tpu.dot_dimension_numbers<[1], [0], [0], [1], [0, 0, 1, 1], [], []>} : vector<16x32xbf16>, vector<32x96xbf16>, vector<16x96xf32> -> vector<16x96xf32>
    %16 = vector.broadcast %2 : vector<1x96xf32> to vector<16x96xf32>
    %17 = arith.addf %15, %16 : vector<16x96xf32>
    %18 = vector.extract_strided_slice %17 {offsets = [0, 0], sizes = [16, 32], strides = [1, 1]} : vector<16x96xf32> to vector<16x32xf32>
    %19 = vector.extract_strided_slice %17 {offsets = [0, 32], sizes = [16, 32], strides = [1, 1]} : vector<16x96xf32> to vector<16x32xf32>
    %20 = vector.extract_strided_slice %17 {offsets = [0, 64], sizes = [16, 32], strides = [1, 1]} : vector<16x96xf32> to vector<16x32xf32>
    %21 = tpu.iota {dimensions = array<i32: 0>} : vector<64x32xi32>
    %22 = tpu.iota {dimensions = array<i32: 1>} : vector<64x32xi32>
    %c4_i32 = arith.constant 4 : i32
    %23 = vector.broadcast %c4_i32 : i32 to vector<64x32xi32>
    %24 = arith.shrsi %21, %23 : vector<64x32xi32>
    %c3_i32 = arith.constant 3 : i32
    %25 = vector.broadcast %c3_i32 : i32 to vector<64x32xi32>
    %26 = arith.shrsi %22, %25 : vector<64x32xi32>
    %27 = arith.cmpi eq, %24, %26 : vector<64x32xi32>
    %28 = arith.extui %27 : vector<64x32xi1> to vector<64x32xi32>
    %29 = arith.sitofp %28 : vector<64x32xi32> to vector<64x32xf32>
    %30 = arith.truncf %29 : vector<64x32xf32> to vector<64x32xbf16>
    %31 = tpu.iota {dimensions = array<i32: 0>} : vector<16x64xi32>
    %32 = tpu.iota {dimensions = array<i32: 1>} : vector<16x64xi32>
    %c3_i32_8 = arith.constant 3 : i32
    %33 = vector.broadcast %c3_i32_8 : i32 to vector<16x64xi32>
    %34 = arith.shrsi %31, %33 : vector<16x64xi32>
    %c15_i32 = arith.constant 15 : i32
    %35 = vector.broadcast %c15_i32 : i32 to vector<16x64xi32>
    %36 = arith.andi %32, %35 : vector<16x64xi32>
    %c3_i32_9 = arith.constant 3 : i32
    %37 = vector.broadcast %c3_i32_9 : i32 to vector<16x64xi32>
    %38 = arith.shrsi %36, %37 : vector<16x64xi32>
    %39 = arith.cmpi eq, %34, %38 : vector<16x64xi32>
    %cst_10 = arith.constant 0.000000e+00 : f32
    %cst_11 = arith.constant 0xFF800000 : f32
    %40 = vector.broadcast %cst_10 : f32 to vector<16x64xf32>
    %41 = vector.broadcast %cst_11 : f32 to vector<16x64xf32>
    %42 = arith.select %39, %40, %41 : vector<16x64xi1>, vector<16x64xf32>
    %43 = tpu.concatenate %19, %19, %19, %19 in 0 : vector<16x32xf32>, vector<16x32xf32>, vector<16x32xf32>, vector<16x32xf32> -> vector<64x32xf32>
    %44 = arith.mulf %43, %29 : vector<64x32xf32>
    %45 = arith.truncf %44 : vector<64x32xf32> to vector<64x32xbf16>
    %46 = tpu.concatenate %20, %20, %20, %20 in 0 : vector<16x32xf32>, vector<16x32xf32>, vector<16x32xf32>, vector<16x32xf32> -> vector<64x32xf32>
    %47 = arith.mulf %46, %29 : vector<64x32xf32>
    %48 = arith.truncf %47 : vector<64x32xf32> to vector<64x32xbf16>
    %49 = arith.truncf %18 : vector<16x32xf32> to vector<16x32xbf16>
    %cst_12 = arith.constant dense<0.000000e+00> : vector<16x64xf32>
    %50 = tpu.matmul %49, %45, %cst_12 {dimension_numbers = #tpu.dot_dimension_numbers<[1], [1], [0], [0], [0, 0, 1, 0], [], []>} : vector<16x32xbf16>, vector<64x32xbf16>, vector<16x64xf32> -> vector<16x64xf32>
    %51 = arith.addf %50, %42 : vector<16x64xf32>
    %cst_13 = arith.constant dense<0xFF800000> : vector<16xf32>
    %52 = vector.multi_reduction <maximumf>, %51, %cst_13 [1] : vector<16x64xf32> to vector<16xf32>
    %53 = vector.shape_cast %52 : vector<16xf32> to vector<16x1xf32>
    %54 = vector.broadcast %53 : vector<16x1xf32> to vector<16x64xf32>
    %55 = arith.subf %51, %54 : vector<16x64xf32>
    %56 = math.exp %55 : vector<16x64xf32>
    %57 = arith.truncf %56 : vector<16x64xf32> to vector<16x64xbf16>
    %cst_14 = arith.constant dense<0.000000e+00> : vector<16x32xf32>
    %58 = tpu.matmul %57, %48, %cst_14 {dimension_numbers = #tpu.dot_dimension_numbers<[1], [0], [0], [1], [0, 0, 1, 1], [], []>} : vector<16x64xbf16>, vector<64x32xbf16>, vector<16x32xf32> -> vector<16x32xf32>
    %cst_15 = arith.constant dense<0.000000e+00> : vector<16x32xf32>
    %59 = tpu.matmul %57, %30, %cst_15 {dimension_numbers = #tpu.dot_dimension_numbers<[1], [0], [0], [1], [0, 0, 1, 1], [], []>} : vector<16x64xbf16>, vector<64x32xbf16>, vector<16x32xf32> -> vector<16x32xf32>
    %60 = tpu.reciprocal %59 : vector<16x32xf32> -> vector<16x32xf32>
    %61 = arith.mulf %58, %60 : vector<16x32xf32>
    %62 = arith.truncf %61 : vector<16x32xf32> to vector<16x32xbf16>
    %cst_16 = arith.constant dense<0.000000e+00> : vector<16x32xf32>
    %63 = tpu.matmul %62, %11, %cst_16 {dimension_numbers = #tpu.dot_dimension_numbers<[1], [0], [0], [1], [0, 0, 1, 1], [], []>} : vector<16x32xbf16>, vector<32x32xbf16>, vector<16x32xf32> -> vector<16x32xf32>
    %64 = vector.broadcast %3 : vector<1x32xf32> to vector<16x32xf32>
    %65 = arith.addf %63, %64 : vector<16x32xf32>
    %66 = arith.addf %0, %65 : vector<16x32xf32>
    %cst_17 = arith.constant dense<0.000000e+00> : vector<16xf32>
    %67 = vector.multi_reduction <add>, %66, %cst_17 [1] : vector<16x32xf32> to vector<16xf32>
    %68 = vector.shape_cast %67 : vector<16xf32> to vector<16x1xf32>
    %cst_18 = arith.constant 3.200000e+01 : f32
    %69 = vector.broadcast %cst_18 : f32 to vector<16x1xf32>
    %70 = arith.divf %68, %69 : vector<16x1xf32>
    %71 = vector.broadcast %70 : vector<16x1xf32> to vector<16x32xf32>
    %72 = arith.subf %66, %71 : vector<16x32xf32>
    %73 = arith.mulf %72, %72 : vector<16x32xf32>
    %cst_19 = arith.constant dense<0.000000e+00> : vector<16xf32>
    %74 = vector.multi_reduction <add>, %73, %cst_19 [1] : vector<16x32xf32> to vector<16xf32>
    %75 = vector.shape_cast %74 : vector<16xf32> to vector<16x1xf32>
    %cst_20 = arith.constant 3.200000e+01 : f32
    %76 = vector.broadcast %cst_20 : f32 to vector<16x1xf32>
    %77 = arith.divf %75, %76 : vector<16x1xf32>
    %78 = vector.broadcast %70 : vector<16x1xf32> to vector<16x32xf32>
    %79 = arith.subf %66, %78 : vector<16x32xf32>
    %cst_21 = arith.constant 9.99999974E-6 : f32
    %80 = vector.broadcast %cst_21 : f32 to vector<16x1xf32>
    %81 = arith.addf %77, %80 : vector<16x1xf32>
    %82 = math.rsqrt %81 : vector<16x1xf32>
    %83 = vector.broadcast %82 : vector<16x1xf32> to vector<16x32xf32>
    %84 = arith.mulf %79, %83 : vector<16x32xf32>
    %85 = vector.broadcast %4 : vector<1x32xf32> to vector<16x32xf32>
    %86 = arith.mulf %84, %85 : vector<16x32xf32>
    %87 = vector.broadcast %5 : vector<1x32xf32> to vector<16x32xf32>
    %88 = arith.addf %86, %87 : vector<16x32xf32>
    %89 = arith.truncf %88 : vector<16x32xf32> to vector<16x32xbf16>
    %cst_22 = arith.constant dense<0.000000e+00> : vector<16x64xf32>
    %90 = tpu.matmul %89, %12, %cst_22 {dimension_numbers = #tpu.dot_dimension_numbers<[1], [0], [0], [1], [0, 0, 1, 1], [], []>} : vector<16x32xbf16>, vector<32x64xbf16>, vector<16x64xf32> -> vector<16x64xf32>
    %91 = vector.broadcast %6 : vector<1x64xf32> to vector<16x64xf32>
    %92 = arith.addf %90, %91 : vector<16x64xf32>
    %cst_23 = arith.constant 0.000000e+00 : f32
    %93 = vector.broadcast %cst_23 : f32 to vector<16x64xf32>
    %94 = arith.maximumf %92, %93 : vector<16x64xf32>
    %95 = arith.truncf %94 : vector<16x64xf32> to vector<16x64xbf16>
    %cst_24 = arith.constant dense<0.000000e+00> : vector<16x32xf32>
    %96 = tpu.matmul %95, %13, %cst_24 {dimension_numbers = #tpu.dot_dimension_numbers<[1], [0], [0], [1], [0, 0, 1, 1], [], []>} : vector<16x64xbf16>, vector<64x32xbf16>, vector<16x32xf32> -> vector<16x32xf32>
    %97 = vector.broadcast %7 : vector<1x32xf32> to vector<16x32xf32>
    %98 = arith.addf %96, %97 : vector<16x32xf32>
    %99 = arith.addf %88, %98 : vector<16x32xf32>
    %cst_25 = arith.constant dense<0.000000e+00> : vector<16xf32>
    %100 = vector.multi_reduction <add>, %99, %cst_25 [1] : vector<16x32xf32> to vector<16xf32>
    %101 = vector.shape_cast %100 : vector<16xf32> to vector<16x1xf32>
    %cst_26 = arith.constant 3.200000e+01 : f32
    %102 = vector.broadcast %cst_26 : f32 to vector<16x1xf32>
    %103 = arith.divf %101, %102 : vector<16x1xf32>
    %104 = vector.broadcast %103 : vector<16x1xf32> to vector<16x32xf32>
    %105 = arith.subf %99, %104 : vector<16x32xf32>
    %106 = arith.mulf %105, %105 : vector<16x32xf32>
    %cst_27 = arith.constant dense<0.000000e+00> : vector<16xf32>
    %107 = vector.multi_reduction <add>, %106, %cst_27 [1] : vector<16x32xf32> to vector<16xf32>
    %108 = vector.shape_cast %107 : vector<16xf32> to vector<16x1xf32>
    %cst_28 = arith.constant 3.200000e+01 : f32
    %109 = vector.broadcast %cst_28 : f32 to vector<16x1xf32>
    %110 = arith.divf %108, %109 : vector<16x1xf32>
    %111 = vector.broadcast %103 : vector<16x1xf32> to vector<16x32xf32>
    %112 = arith.subf %99, %111 : vector<16x32xf32>
    %cst_29 = arith.constant 9.99999974E-6 : f32
    %113 = vector.broadcast %cst_29 : f32 to vector<16x1xf32>
    %114 = arith.addf %110, %113 : vector<16x1xf32>
    %115 = math.rsqrt %114 : vector<16x1xf32>
    %116 = vector.broadcast %115 : vector<16x1xf32> to vector<16x32xf32>
    %117 = arith.mulf %112, %116 : vector<16x32xf32>
    %118 = vector.broadcast %8 : vector<1x32xf32> to vector<16x32xf32>
    %119 = arith.mulf %117, %118 : vector<16x32xf32>
    %120 = vector.broadcast %9 : vector<1x32xf32> to vector<16x32xf32>
    %121 = arith.addf %119, %120 : vector<16x32xf32>
    %c0_30 = arith.constant 0 : index
    %c0_31 = arith.constant 0 : index
    %122 = vector.load %arg3[%c0_30, %c0_31] : memref<16x32xf32, #tpu.memory_space<vmem>>, vector<16x32xf32>
    tpu.vector_store %arg3[%c0_30, %c0_31], %121 {strides = array<i32>} : memref<16x32xf32, #tpu.memory_space<vmem>>, vector<16x32xf32>,
    return
  }
}

</mosaic_0001>

<llo_original>
// kernel: encoder_block.1
$region0: #{encoder_block.1}
  #allocation0 [shape = 'u32[]', space=smem, size = 0x4, offset = 0x4, fixed_abs, tag = 'smem constant byte address 0x4 - core index']
  #allocation1 [shape = 'u32[144,128]{1,0:T(1,128)}', space=vmem, size = 0x12000, scoped, tag = 'internal scratch']
  %s0 = inlined_call_operand.hbm [shape: f32[16,32], index: 0, kind: input, shape index: {}]
  %s1 = inlined_call_operand.hbm [shape: bf16[160,96], index: 1, kind: input, shape index: {}]
  %s2 = inlined_call_operand.vmem [shape: f32[8,96], index: 2, kind: input, shape index: {}]
  %s3 = inlined_call_operand.hbm [shape: f32[16,32], index: 3, kind: output, shape index: {}]
  %s4 = sld [smem:[#allocation0]]
  $region30: #{encoder_block.1} parent=0
    _
  %s6 = ssub.s32 1, %s4
  %s7 = scalar_select 0, %s6, %s4
  $region1: #{encoder_block.1} parent=0
    #allocation2 [shape = 'u8[8192]{0}', space=vmem, size = 0x2000, scoped, tag = 'input window, operand 0, single buffered']
    #allocation3 [shape = 's32[1]{0}', space=sflag, size = 0x4, scoped, tag = 'scoped memory for encoder_block.1']
    #allocation4 [shape = 's32[1]{0}', space=sflag, size = 0x4, scoped, tag = 'scoped memory for encoder_block.1']
    #allocation5 [shape = 'u8[40960]{0}', space=vmem, size = 0xa000, scoped, tag = 'input window, operand 1, single buffered']
    #allocation6 [shape = 's32[1]{0}', space=sflag, size = 0x4, scoped, tag = 'scoped memory for encoder_block.1']
    #allocation7 [shape = 'u8[8192]{0}', space=vmem, size = 0x2000, scoped, tag = 'output window, operand 0, single buffered']
    %8 = vsyncpa [#allocation3], 0
    %9 = vsyncpa [#allocation6], 0
    %10 = vsyncpa [#allocation4], 0
    // Predicated region
    $region2: #{encoder_block.1} parent=1 // pred_check
      _
    $region3: #{encoder_block.1} parent=1 // pred_check_branch
      %12 = sbr.rel (0) target = $region5
    $region4: #{encoder_block.1} parent=1 // pred_region
      %s14 = ssub.s32 256, 256
      %15 = vsyncadd [#allocation3], %s14
      %s16 = sshll.u32 [#allocation2], 4
      %s17 = int_to_ptr.vmem [resolvable:$true] %s16
      %22 = dma.hbm_to_vmem [thread:$0]  %s0, 256, %s17, [#allocation3], 128, 128, 8
    $region5: #{encoder_block.1} parent=1 // pred_fallthru
      _
    // Predicated region
    $region6: #{encoder_block.1} parent=1 // pred_check
      _
    $region7: #{encoder_block.1} parent=1 // pred_check_branch
      %24 = sbr.rel (0) target = $region9
    $region8: #{encoder_block.1} parent=1 // pred_region
      %s26 = ssub.s32 1280, 1280
      %27 = vsyncadd [#allocation6], %s26
      %s28 = sshll.u32 [#allocation5], 4
      %s29 = int_to_ptr.vmem [resolvable:$true] %s28
      %34 = dma.hbm_to_vmem [thread:$0]  %s1, 1280, %s29, [#allocation6], 64, 64, 4
    $region9: #{encoder_block.1} parent=1 // pred_fallthru
      _
    // Predicated region
    $region10: #{encoder_block.1} parent=1 // pred_check
      _
    $region11: #{encoder_block.1} parent=1 // pred_check_branch
      %36 = sbr.rel (0) target = $region13
    $region12: #{encoder_block.1} parent=1 // pred_region
      _
    $region13: #{encoder_block.1} parent=1 // pred_fallthru
      _
    // Predicated region
    $region14: #{encoder_block.1} parent=1 // pred_check
      _
    $region15: #{encoder_block.1} parent=1 // pred_check_branch
      %38 = sbr.rel (0) target = $region17
    $region16: #{encoder_block.1} parent=1 // pred_region
      %39 = dma.done [#allocation3], 256
    $region17: #{encoder_block.1} parent=1 // pred_fallthru
      _
    // Predicated region
    $region18: #{encoder_block.1} parent=1 // pred_check
      _
    $region19: #{encoder_block.1} parent=1 // pred_check_branch
      %41 = sbr.rel (0) target = $region21
    $region20: #{encoder_block.1} parent=1 // pred_region
      %42 = dma.done [#allocation6], 1280
    $region21: #{encoder_block.1} parent=1 // pred_fallthru
      _
    %v44 = vld [vmem:[#allocation2] sm:$0xff]
    %v45 = vld [vmem:[#allocation2 + $0x8] sm:$0xff]
    %v46 = vld [vmem:[%s2] sm:$0xff]
    %v47 = vld [vmem:[#allocation5] sm:$0xf]
    %v48 = vld [vmem:[#allocation5 + $0x4] sm:$0xf]
    %v49 = vld [vmem:[#allocation5 + $0x8] sm:$0xf]
    %v50 = vld [vmem:[#allocation5 + $0xc] sm:$0xf]
    %v51 = vld [vmem:[#allocation5 + $0x10] sm:$0xf]
    %v52 = vld [vmem:[#allocation5 + $0x14] sm:$0xf]
    %v53 = vld [vmem:[#allocation5 + $0x18] sm:$0xf]
    %v54 = vld [vmem:[#allocation5 + $0x1c] sm:$0xf]
    %v55 = vld [vmem:[#allocation5 + $0x20] sm:$0xf]
    %v56 = vld [vmem:[#allocation5 + $0x24] sm:$0xf]
    %v57 = vld [vmem:[#allocation5 + $0x28] sm:$0xf]
    %v58 = vld [vmem:[#allocation5 + $0x2c] sm:$0xf]
    %v59 = vld [vmem:[#allocation5 + $0x30] sm:$0xf]
    %v60 = vld [vmem:[#allocation5 + $0x34] sm:$0xf]
    %v61 = vld [vmem:[#allocation5 + $0x38] sm:$0xf]
    %v62 = vld [vmem:[#allocation5 + $0x3c] sm:$0xf]
    %v63 = vld [vmem:[#allocation5 + $0x40] sm:$0xf]
    %v64 = vld [vmem:[#allocation5 + $0x44] sm:$0xf]
    %v65 = vld [vmem:[#allocation5 + $0x48] sm:$0xf]
    %v66 = vld [vmem:[#allocation5 + $0x4c] sm:$0xf]
    %v67 = vpack.c.bf16 %v45, %v44
    %v68 = vlaneseq
    %v69 = vshrl.u32 %v68, 7
    %v70 = vsub.s32 0, %v69
    %v71 = vrot.slane %v46, %v70
    %v76 = vunpack.c.l.b16 %v47
    %v77 = vunpack.c.l.b16 %v48
    %v78 = vunpack.c.l.b16 %v49
    %v79 = vunpack.c.l.b16 %v50
    %v80 = vpack.c.b16 %v77, %v76
    %v81 = vpack.c.b16 %v79, %v78
    %vm84 = vcmask 261120
    %v86 = vsel %vm84, %v67, 0
    %88 = vmatprep.subr.bf16.mxu0 0
    %89 = vmatpush1.bf16.msra.mxu0 %v80
    %90 = vmatprep.subr.bf16.mxu0 0
    %91 = vmatpush1.bf16.msra.mxu0 %v81
    %92 = vmatprep.subr.bf16.mxu0 0
    %93 = vmatpush1.bf16.msra.mxu0 0
    %94 = vmatprep.subr.bf16.mxu0 0
    %95 = vmatpush1.bf16.msra.mxu0 0
    %96 = vmatprep.subr.bf16.mxu0 0
    %97 = vmatpush1.bf16.msra.mxu0 0
    %98 = vmatprep.subr.bf16.mxu0 0
    %99 = vmatpush1.bf16.msra.mxu0 0
    %100 = vmatprep.subr.bf16.mxu0 0
    %101 = vmatpush1.bf16.msra.mxu0 0
    %102 = vmatprep.subr.bf16.mxu0 0
    %103 = vmatpush1.bf16.msra.mxu0 0
    %104 = vmatprep.subr.bf16.mxu0 0
    %105 = vmatpush1.bf16.msra.mxu0 0
    %106 = vmatprep.subr.bf16.mxu0 0
    %107 = vmatpush1.bf16.msra.mxu0 0
    %108 = vmatprep.subr.bf16.mxu0 0
    %109 = vmatpush1.bf16.msra.mxu0 0
    %110 = vmatprep.subr.bf16.mxu0 0
    %111 = vmatpush1.bf16.msra.mxu0 0
    %112 = vmatprep.subr.bf16.mxu0 0
    %113 = vmatpush1.bf16.msra.mxu0 0
    %114 = vmatprep.subr.bf16.mxu0 0
    %115 = vmatpush1.bf16.msra.mxu0 0
    %116 = vmatprep.subr.bf16.mxu0 0
    %117 = vmatpush1.bf16.msra.mxu0 0
    %118 = vmatprep.subr.bf16.mxu0 0
    %119 = vmatpush1.bf16.msra.mxu0 0
    %120 = vmatprep.mubr.bf16.mxu0 0
    %121 = vmatmul.mubr.bf16.gmra.mrb[0].mxu0 %v86
    %v122 = vpop.f32.mrb[0].mxu0
    %v123 = vadd.f32 %v71, %v122
    %v124 = vpop.f32.mrb[0].mxu0
    %v125 = vpop.f32.mrb[0].mxu0
    %v126 = vadd.f32 %v71, %v125
    %v127 = vpop.f32.mrb[0].mxu0
    %128 = vdwg.mxu0
    %v129 = vlaneseq
    %v130 = vshrl.u32 %v129, 7
    %v131 = vadd.s32 %v130, 8
    %v132 = vadd.s32 %v130, 16
    %v133 = vadd.s32 %v130, 24
    %v134 = vadd.s32 %v130, 32
    %v135 = vadd.s32 %v130, 40
    %v136 = vadd.s32 %v130, 48
    %v137 = vadd.s32 %v130, 56
    %v138 = vlaneseq
    %v139 = vand.u32 %v138, 127
    %v140 = vshra.s32 %v130, 4
    %v141 = vshra.s32 %v131, 4
    %v142 = vshra.s32 %v132, 4
    %v143 = vshra.s32 %v133, 4
    %v144 = vshra.s32 %v134, 4
    %v145 = vshra.s32 %v135, 4
    %v146 = vshra.s32 %v136, 4
    %v147 = vshra.s32 %v137, 4
    %v148 = vshra.s32 %v139, 3
    %vm149 = vcmp.eq.s32.totalorder %v140, %v148
    %vm150 = vcmp.eq.s32.totalorder %v141, %v148
    %vm151 = vcmp.eq.s32.totalorder %v142, %v148
    %vm152 = vcmp.eq.s32.totalorder %v143, %v148
    %vm153 = vcmp.eq.s32.totalorder %v144, %v148
    %vm154 = vcmp.eq.s32.totalorder %v145, %v148
    %vm155 = vcmp.eq.s32.totalorder %v146, %v148
    %vm156 = vcmp.eq.s32.totalorder %v147, %v148
    %v157 = vsel %vm149, 1, 0
    %v158 = vsel %vm150, 1, 0
    %v159 = vsel %vm151, 1, 0
    %v160 = vsel %vm152, 1, 0
    %v161 = vsel %vm153, 1, 0
    %v162 = vsel %vm154, 1, 0
    %v163 = vsel %vm155, 1, 0
    %v164 = vsel %vm156, 1, 0
    %v165 = vcvt.s32.f32 %v157
    %v166 = vcvt.s32.f32 %v158
    %v167 = vcvt.s32.f32 %v159
    %v168 = vcvt.s32.f32 %v160
    %v169 = vcvt.s32.f32 %v161
    %v170 = vcvt.s32.f32 %v162
    %v171 = vcvt.s32.f32 %v163
    %v172 = vcvt.s32.f32 %v164
    %v173 = vpack.c.bf16 %v166, %v165
    %v174 = vpack.c.bf16 %v168, %v167
    %v175 = vpack.c.bf16 %v170, %v169
    %v176 = vpack.c.bf16 %v172, %v171
    %v177 = vshra.s32 %v130, 3
    %v178 = vshra.s32 %v131, 3
    %v179 = vand.u32 %v139, 15
    %v180 = vshra.s32 %v179, 3
    %vm181 = vcmp.eq.s32.totalorder %v177, %v180
    %vm182 = vcmp.eq.s32.totalorder %v178, %v180
    %v183 = vsel %vm181, 0.0, -inf
    %v184 = vsel %vm182, 0.0, -inf
    %193 = vrot.lane.b32.xlu0 %v165, 32
    %v194 = vpop.permute.xlu0 %193
    %195 = vrot.lane.b32.xlu0 %v166, 32
    %v196 = vpop.permute.xlu0 %195
    %197 = vrot.lane.b32.xlu0 %v167, 32
    %v198 = vpop.permute.xlu0 %197
    %199 = vrot.lane.b32.xlu0 %v168, 32
    %v200 = vpop.permute.xlu0 %199
    %201 = vrot.lane.b32.xlu0 %v169, 32
    %v202 = vpop.permute.xlu0 %201
    %203 = vrot.lane.b32.xlu0 %v170, 32
    %v204 = vpop.permute.xlu0 %203
    %205 = vrot.lane.b32.xlu0 %v171, 32
    %v206 = vpop.permute.xlu0 %205
    %207 = vrot.lane.b32.xlu0 %v172, 32
    %v208 = vpop.permute.xlu0 %207
    %v217 = vmul.f32 %v123, %v194
    %v218 = vmul.f32 %v126, %v196
    %v219 = vmul.f32 %v123, %v198
    %v220 = vmul.f32 %v126, %v200
    %v221 = vmul.f32 %v123, %v202
    %v222 = vmul.f32 %v126, %v204
    %v223 = vmul.f32 %v123, %v206
    %v224 = vmul.f32 %v126, %v208
    %v225 = vpack.c.bf16 %v218, %v217
    %v226 = vpack.c.bf16 %v220, %v219
    %v227 = vpack.c.bf16 %v222, %v221
    %v228 = vpack.c.bf16 %v224, %v223
    %229 = vrot.lane.b32.xlu0 %v165, 64
    %v230 = vpop.permute.xlu0 %229
    %231 = vrot.lane.b32.xlu0 %v166, 64
    %v232 = vpop.permute.xlu0 %231
    %233 = vrot.lane.b32.xlu0 %v167, 64
    %v234 = vpop.permute.xlu0 %233
    %235 = vrot.lane.b32.xlu0 %v168, 64
    %v236 = vpop.permute.xlu0 %235
    %237 = vrot.lane.b32.xlu0 %v169, 64
    %v238 = vpop.permute.xlu0 %237
    %239 = vrot.lane.b32.xlu0 %v170, 64
    %v240 = vpop.permute.xlu0 %239
    %241 = vrot.lane.b32.xlu0 %v171, 64
    %v242 = vpop.permute.xlu0 %241
    %243 = vrot.lane.b32.xlu0 %v172, 64
    %v244 = vpop.permute.xlu0 %243
    %v253 = vmul.f32 %v123, %v230
    %v254 = vmul.f32 %v126, %v232
    %v255 = vmul.f32 %v123, %v234
    %v256 = vmul.f32 %v126, %v236
    %v257 = vmul.f32 %v123, %v238
    %v258 = vmul.f32 %v126, %v240
    %v259 = vmul.f32 %v123, %v242
    %v260 = vmul.f32 %v126, %v244
    %v261 = vpack.c.bf16 %v254, %v253
    %v262 = vpack.c.bf16 %v256, %v255
    %v263 = vpack.c.bf16 %v258, %v257
    %v264 = vpack.c.bf16 %v260, %v259
    %v265 = vpack.c.bf16 %v126, %v123
    %270 = vrot.lane.b32.xlu0 %v225, 96
    %v271 = vpop.permute.xlu0 %270
    %272 = vrot.lane.b32.xlu0 %v226, 96
    %v273 = vpop.permute.xlu0 %272
    %274 = vrot.lane.b32.xlu0 %v227, 96
    %v275 = vpop.permute.xlu0 %274
    %276 = vrot.lane.b32.xlu0 %v228, 96
    %v277 = vpop.permute.xlu0 %276
    %v279 = vsel %vm84, %v265, 0
    %v282 = vsel %vm84, %v271, 0
    %v285 = vsel %vm84, %v273, 0
    %v288 = vsel %vm84, %v275, 0
    %v291 = vsel %vm84, %v277, 0
    %293 = vmatprep.subr.bf16.mxu0 0
    %294 = vmatpush1.bf16.xpose.msra.mxu0 %v282
    %295 = vmatprep.subr.bf16.mxu0 0
    %296 = vmatpush1.bf16.xpose.msra.mxu0 %v285
    %297 = vmatprep.subr.bf16.mxu0 0
    %298 = vmatpush1.bf16.xpose.msra.mxu0 %v288
    %299 = vmatprep.subr.bf16.mxu0 0
    %300 = vmatpush1.bf16.xpose.msra.mxu0 %v291
    %301 = vmatprep.subr.bf16.mxu0 0
    %302 = vmatpush1.bf16.xpose.msra.mxu0 0
    %303 = vmatprep.subr.bf16.mxu0 0
    %304 = vmatpush1.bf16.xpose.msra.mxu0 0
    %305 = vmatprep.subr.bf16.mxu0 0
    %306 = vmatpush1.bf16.xpose.msra.mxu0 0
    %307 = vmatprep.subr.bf16.mxu0 0
    %308 = vmatpush1.bf16.xpose.msra.mxu0 0
    %309 = vmatprep.subr.bf16.mxu0 0
    %310 = vmatpush1.bf16.xpose.msra.mxu0 0
    %311 = vmatprep.subr.bf16.mxu0 0
    %312 = vmatpush1.bf16.xpose.msra.mxu0 0
    %313 = vmatprep.subr.bf16.mxu0 0
    %314 = vmatpush1.bf16.xpose.msra.mxu0 0
    %315 = vmatprep.subr.bf16.mxu0 0
    %316 = vmatpush1.bf16.xpose.msra.mxu0 0
    %317 = vmatprep.subr.bf16.mxu0 0
    %318 = vmatpush1.bf16.xpose.msra.mxu0 0
    %319 = vmatprep.subr.bf16.mxu0 0
    %320 = vmatpush1.bf16.xpose.msra.mxu0 0
    %321 = vmatprep.subr.bf16.mxu0 0
    %322 = vmatpush1.bf16.xpose.msra.mxu0 0
    %323 = vmatprep.subr.bf16.mxu0 0
    %324 = vmatpush1.bf16.xpose.msra.mxu0 0
    %325 = vmatprep.mubr.bf16.mxu0 0
    %326 = vmatmul.mubr.bf16.gmra.mrb[0].mxu0 %v279
    %v327 = vpop.f32.mrb[0].mxu0
    %v328 = vadd.f32 %v183, %v327
    %v329 = vpop.f32.mrb[0].mxu0
    %v330 = vpop.f32.mrb[0].mxu0
    %v331 = vadd.f32 %v184, %v330
    %v332 = vpop.f32.mrb[0].mxu0
    %333 = vdwg.mxu0
    %vm334 = vcmask 523264
    %v335 = vsel %vm334, %v328, -inf
    %336 = vmax.xlane.f32.xlu0 %v335
    %v337 = vpop.xlane.xlu0 %336
    %v338 = vsel %vm334, %v331, -inf
    %339 = vmax.xlane.f32.xlu0 %v338
    %v340 = vpop.xlane.xlu0 %339
    %v341 = vsub.f32 %v328, %v337
    %v342 = vsub.f32 %v331, %v340
    %v343 = vmul.f32 %v341, 1.442695
    %v344 = vpow.pop %v343
    %v345 = vmul.f32 %v342, 1.442695
    %v346 = vpow.pop %v345
    %v347 = vpack.c.bf16 %v346, %v344
    %352 = vrot.lane.b32.xlu0 %v261, 64
    %v353 = vpop.permute.xlu0 %352
    %354 = vrot.lane.b32.xlu0 %v262, 64
    %v355 = vpop.permute.xlu0 %354
    %356 = vrot.lane.b32.xlu0 %v263, 64
    %v357 = vpop.permute.xlu0 %356
    %358 = vrot.lane.b32.xlu0 %v264, 64
    %v359 = vpop.permute.xlu0 %358
    %v365 = vsel %vm334, %v347, 0
    %367 = vmatprep.subr.bf16.mxu0 0
    %368 = vmatpush1.bf16.msra.mxu0 %v353
    %369 = vmatprep.subr.bf16.mxu0 0
    %370 = vmatpush1.bf16.msra.mxu0 %v355
    %371 = vmatprep.subr.bf16.mxu0 0
    %372 = vmatpush1.bf16.msra.mxu0 %v357
    %373 = vmatprep.subr.bf16.mxu0 0
    %374 = vmatpush1.bf16.msra.mxu0 %v359
    %375 = vmatprep.subr.bf16.mxu0 0
    %376 = vmatpush1.bf16.msra.mxu0 0
    %377 = vmatprep.subr.bf16.mxu0 0
    %378 = vmatpush1.bf16.msra.mxu0 0
    %379 = vmatprep.subr.bf16.mxu0 0
    %380 = vmatpush1.bf16.msra.mxu0 0
    %381 = vmatprep.subr.bf16.mxu0 0
    %382 = vmatpush1.bf16.msra.mxu0 0
    %383 = vmatprep.subr.bf16.mxu0 0
    %384 = vmatpush1.bf16.msra.mxu0 0
    %385 = vmatprep.subr.bf16.mxu0 0
    %386 = vmatpush1.bf16.msra.mxu0 0
    %387 = vmatprep.subr.bf16.mxu0 0
    %388 = vmatpush1.bf16.msra.mxu0 0
    %389 = vmatprep.subr.bf16.mxu0 0
    %390 = vmatpush1.bf16.msra.mxu0 0
    %391 = vmatprep.subr.bf16.mxu0 0
    %392 = vmatpush1.bf16.msra.mxu0 0
    %393 = vmatprep.subr.bf16.mxu0 0
    %394 = vmatpush1.bf16.msra.mxu0 0
    %395 = vmatprep.subr.bf16.mxu0 0
    %396 = vmatpush1.bf16.msra.mxu0 0
    %397 = vmatprep.subr.bf16.mxu0 0
    %398 = vmatpush1.bf16.msra.mxu0 0
    %399 = vmatprep.mubr.bf16.mxu0 0
    %400 = vmatmul.mubr.bf16.gmra.mrb[0].mxu0 %v365
    %v401 = vpop.f32.mrb[0].mxu0
    %v402 = vadd.f32 0.0, %v401
    %v403 = vpop.f32.mrb[0].mxu0
    %v404 = vpop.f32.mrb[0].mxu0
    %v405 = vadd.f32 0.0, %v404
    %v406 = vpop.f32.mrb[0].mxu0
    %407 = vdwg.mxu0
    %408 = vmatprep.subr.bf16.mxu0 0
    %409 = vmatpush1.bf16.msra.mxu0 %v173
    %410 = vmatprep.subr.bf16.mxu0 0
    %411 = vmatpush1.bf16.msra.mxu0 %v174
    %412 = vmatprep.subr.bf16.mxu0 0
    %413 = vmatpush1.bf16.msra.mxu0 %v175
    %414 = vmatprep.subr.bf16.mxu0 0
    %415 = vmatpush1.bf16.msra.mxu0 %v176
    %416 = vmatprep.subr.bf16.mxu0 0
    %417 = vmatpush1.bf16.msra.mxu0 0
    %418 = vmatprep.subr.bf16.mxu0 0
    %419 = vmatpush1.bf16.msra.mxu0 0
    %420 = vmatprep.subr.bf16.mxu0 0
    %421 = vmatpush1.bf16.msra.mxu0 0
    %422 = vmatprep.subr.bf16.mxu0 0
    %423 = vmatpush1.bf16.msra.mxu0 0
    %424 = vmatprep.subr.bf16.mxu0 0
    %425 = vmatpush1.bf16.msra.mxu0 0
    %426 = vmatprep.subr.bf16.mxu0 0
    %427 = vmatpush1.bf16.msra.mxu0 0
    %428 = vmatprep.subr.bf16.mxu0 0
    %429 = vmatpush1.bf16.msra.mxu0 0
    %430 = vmatprep.subr.bf16.mxu0 0
    %431 = vmatpush1.bf16.msra.mxu0 0
    %432 = vmatprep.subr.bf16.mxu0 0
    %433 = vmatpush1.bf16.msra.mxu0 0
    %434 = vmatprep.subr.bf16.mxu0 0
    %435 = vmatpush1.bf16.msra.mxu0 0
    %436 = vmatprep.subr.bf16.mxu0 0
    %437 = vmatpush1.bf16.msra.mxu0 0
    %438 = vmatprep.subr.bf16.mxu0 0
    %439 = vmatpush1.bf16.msra.mxu0 0
    %440 = vmatprep.mubr.bf16.mxu0 0
    %441 = vmatmul.mubr.bf16.gmra.mrb[0].mxu0 %v365
    %v442 = vpop.f32.mrb[0].mxu0
    %v443 = vadd.f32 0.0, %v442
    %v444 = vpop.f32.mrb[0].mxu0
    %v445 = vpop.f32.mrb[0].mxu0
    %v446 = vadd.f32 0.0, %v445
    %v447 = vpop.f32.mrb[0].mxu0
    %448 = vdwg.mxu0
    %v449 = vrcp.pop %v443
    %v450 = vrcp.pop %v446
    %v451 = vmul.f32 %v402, %v449
    %v452 = vmul.f32 %v405, %v450
    %v453 = vpack.c.bf16 %v452, %v451
    %v454 = vlaneseq
    %v455 = vshrl.u32 %v454, 7
    %v456 = vsub.s32 1, %v455
    %v457 = vrot.slane %v46, %v456
    %v462 = vunpack.c.l.b16 %v51
    %v463 = vunpack.c.l.b16 %v52
    %v464 = vunpack.c.l.b16 %v53
    %v465 = vunpack.c.l.b16 %v54
    %v466 = vpack.c.b16 %v463, %v462
    %v467 = vpack.c.b16 %v465, %v464
    %v471 = vsel %vm84, %v453, 0
    %473 = vmatprep.subr.bf16.mxu0 0
    %474 = vmatpush1.bf16.msra.mxu0 %v466
    %475 = vmatprep.subr.bf16.mxu0 0
    %476 = vmatpush1.bf16.msra.mxu0 %v467
    %477 = vmatprep.subr.bf16.mxu0 0
    %478 = vmatpush1.bf16.msra.mxu0 0
    %479 = vmatprep.subr.bf16.mxu0 0
    %480 = vmatpush1.bf16.msra.mxu0 0
    %481 = vmatprep.subr.bf16.mxu0 0
    %482 = vmatpush1.bf16.msra.mxu0 0
    %483 = vmatprep.subr.bf16.mxu0 0
    %484 = vmatpush1.bf16.msra.mxu0 0
    %485 = vmatprep.subr.bf16.mxu0 0
    %486 = vmatpush1.bf16.msra.mxu0 0
    %487 = vmatprep.subr.bf16.mxu0 0
    %488 = vmatpush1.bf16.msra.mxu0 0
    %489 = vmatprep.subr.bf16.mxu0 0
    %490 = vmatpush1.bf16.msra.mxu0 0
    %491 = vmatprep.subr.bf16.mxu0 0
    %492 = vmatpush1.bf16.msra.mxu0 0
    %493 = vmatprep.subr.bf16.mxu0 0
    %494 = vmatpush1.bf16.msra.mxu0 0
    %495 = vmatprep.subr.bf16.mxu0 0
    %496 = vmatpush1.bf16.msra.mxu0 0
    %497 = vmatprep.subr.bf16.mxu0 0
    %498 = vmatpush1.bf16.msra.mxu0 0
    %499 = vmatprep.subr.bf16.mxu0 0
    %500 = vmatpush1.bf16.msra.mxu0 0
    %501 = vmatprep.subr.bf16.mxu0 0
    %502 = vmatpush1.bf16.msra.mxu0 0
    %503 = vmatprep.subr.bf16.mxu0 0
    %504 = vmatpush1.bf16.msra.mxu0 0
    %505 = vmatprep.mubr.bf16.mxu0 0
    %506 = vmatmul.mubr.bf16.gmra.mrb[0].mxu0 %v471
    %v507 = vpop.f32.mrb[0].mxu0
    %v508 = vadd.f32 %v457, %v507
    %v509 = vpop.f32.mrb[0].mxu0
    %v510 = vpop.f32.mrb[0].mxu0
    %v511 = vadd.f32 %v457, %v510
    %v512 = vpop.f32.mrb[0].mxu0
    %513 = vdwg.mxu0
    %v514 = vadd.f32 %v44, %v508
    %v515 = vadd.f32 %v45, %v511
    %v516 = vsel %vm84, %v514, 0.0
    %517 = vadd.xlane.f32.xlu0 %v516
    %v518 = vpop.xlane.xlu0 %517
    %v519 = vsel %vm84, %v515, 0.0
    %520 = vadd.xlane.f32.xlu0 %v519
    %v521 = vpop.xlane.xlu0 %520
    %v522 = vrcp.pop 32.0
    %v523 = vmul.f32 %v518, %v522
    %v524 = vmul.f32 %v521, %v522
    %v525 = vsub.f32 %v514, %v523
    %v526 = vsub.f32 %v515, %v524
    %v527 = vmul.f32 %v525, %v525
    %v528 = vmul.f32 %v526, %v526
    %v529 = vsel %vm84, %v527, 0.0
    %530 = vadd.xlane.f32.xlu0 %v529
    %v531 = vpop.xlane.xlu0 %530
    %v532 = vsel %vm84, %v528, 0.0
    %533 = vadd.xlane.f32.xlu0 %v532
    %v534 = vpop.xlane.xlu0 %533
    %v535 = vmul.f32 %v531, %v522
    %v536 = vmul.f32 %v534, %v522
    %v537 = vadd.f32 %v535, 1e-05
    %v538 = vadd.f32 %v536, 1e-05
    %v539 = vrsqrt.pop %v537
    %v540 = vrsqrt.pop %v538
    %v541 = vmul.f32 %v525, %v539
    %v542 = vmul.f32 %v526, %v540
    %v543 = vlaneseq
    %v544 = vshrl.u32 %v543, 7
    %v545 = vsub.s32 2, %v544
    %v546 = vrot.slane %v46, %v545
    %v547 = vmul.f32 %v541, %v546
    %v548 = vmul.f32 %v542, %v546
    %v549 = vlaneseq
    %v550 = vshrl.u32 %v549, 7
    %v551 = vsub.s32 3, %v550
    %v552 = vrot.slane %v46, %v551
    %v553 = vadd.f32 %v547, %v552
    %v554 = vadd.f32 %v548, %v552
    %v555 = vpack.c.bf16 %v554, %v553
    %v556 = vlaneseq
    %v557 = vshrl.u32 %v556, 7
    %v558 = vsub.s32 4, %v557
    %v559 = vrot.slane %v46, %v558
    %v564 = vunpack.c.l.b16 %v55
    %v565 = vunpack.c.l.b16 %v56
    %v566 = vunpack.c.l.b16 %v57
    %v567 = vunpack.c.l.b16 %v58
    %v568 = vpack.c.b16 %v565, %v564
    %v569 = vpack.c.b16 %v567, %v566
    %v573 = vsel %vm84, %v555, 0
    %575 = vmatprep.subr.bf16.mxu0 0
    %576 = vmatpush1.bf16.msra.mxu0 %v568
    %577 = vmatprep.subr.bf16.mxu0 0
    %578 = vmatpush1.bf16.msra.mxu0 %v569
    %579 = vmatprep.subr.bf16.mxu0 0
    %580 = vmatpush1.bf16.msra.mxu0 0
    %581 = vmatprep.subr.bf16.mxu0 0
    %582 = vmatpush1.bf16.msra.mxu0 0
    %583 = vmatprep.subr.bf16.mxu0 0
    %584 = vmatpush1.bf16.msra.mxu0 0
    %585 = vmatprep.subr.bf16.mxu0 0
    %586 = vmatpush1.bf16.msra.mxu0 0
    %587 = vmatprep.subr.bf16.mxu0 0
    %588 = vmatpush1.bf16.msra.mxu0 0
    %589 = vmatprep.subr.bf16.mxu0 0
    %590 = vmatpush1.bf16.msra.mxu0 0
    %591 = vmatprep.subr.bf16.mxu0 0
    %592 = vmatpush1.bf16.msra.mxu0 0
    %593 = vmatprep.subr.bf16.mxu0 0
    %594 = vmatpush1.bf16.msra.mxu0 0
    %595 = vmatprep.subr.bf16.mxu0 0
    %596 = vmatpush1.bf16.msra.mxu0 0
    %597 = vmatprep.subr.bf16.mxu0 0
    %598 = vmatpush1.bf16.msra.mxu0 0
    %599 = vmatprep.subr.bf16.mxu0 0
    %600 = vmatpush1.bf16.msra.mxu0 0
    %601 = vmatprep.subr.bf16.mxu0 0
    %602 = vmatpush1.bf16.msra.mxu0 0
    %603 = vmatprep.subr.bf16.mxu0 0
    %604 = vmatpush1.bf16.msra.mxu0 0
    %605 = vmatprep.subr.bf16.mxu0 0
    %606 = vmatpush1.bf16.msra.mxu0 0
    %607 = vmatprep.mubr.bf16.mxu0 0
    %608 = vmatmul.mubr.bf16.gmra.mrb[0].mxu0 %v573
    %v609 = vpop.f32.mrb[0].mxu0
    %v610 = vadd.f32 %v559, %v609
    %v611 = vpop.f32.mrb[0].mxu0
    %v612 = vpop.f32.mrb[0].mxu0
    %v613 = vadd.f32 %v559, %v612
    %v614 = vpop.f32.mrb[0].mxu0
    %615 = vdwg.mxu0
    %v616 = vmax.f32 %v610, 0.0
    %v617 = vmax.f32 %v613, 0.0
    %v618 = vpack.c.bf16 %v617, %v616
    %v619 = vlaneseq
    %v620 = vshrl.u32 %v619, 7
    %v621 = vsub.s32 5, %v620
    %v622 = vrot.slane %v46, %v621
    %v631 = vunpack.c.l.b16 %v59
    %v632 = vunpack.c.l.b16 %v60
    %v633 = vunpack.c.l.b16 %v61
    %v634 = vunpack.c.l.b16 %v62
    %v635 = vunpack.c.l.b16 %v63
    %v636 = vunpack.c.l.b16 %v64
    %v637 = vunpack.c.l.b16 %v65
    %v638 = vunpack.c.l.b16 %v66
    %v639 = vpack.c.b16 %v632, %v631
    %v640 = vpack.c.b16 %v634, %v633
    %v641 = vpack.c.b16 %v636, %v635
    %v642 = vpack.c.b16 %v638, %v637
    %v648 = vsel %vm334, %v618, 0
    %650 = vmatprep.subr.bf16.mxu0 0
    %651 = vmatpush1.bf16.msra.mxu0 %v639
    %652 = vmatprep.subr.bf16.mxu0 0
    %653 = vmatpush1.bf16.msra.mxu0 %v640
    %654 = vmatprep.subr.bf16.mxu0 0
    %655 = vmatpush1.bf16.msra.mxu0 %v641
    %656 = vmatprep.subr.bf16.mxu0 0
    %657 = vmatpush1.bf16.msra.mxu0 %v642
    %658 = vmatprep.subr.bf16.mxu0 0
    %659 = vmatpush1.bf16.msra.mxu0 0
    %660 = vmatprep.subr.bf16.mxu0 0
    %661 = vmatpush1.bf16.msra.mxu0 0
    %662 = vmatprep.subr.bf16.mxu0 0
    %663 = vmatpush1.bf16.msra.mxu0 0
    %664 = vmatprep.subr.bf16.mxu0 0
    %665 = vmatpush1.bf16.msra.mxu0 0
    %666 = vmatprep.subr.bf16.mxu0 0
    %667 = vmatpush1.bf16.msra.mxu0 0
    %668 = vmatprep.subr.bf16.mxu0 0
    %669 = vmatpush1.bf16.msra.mxu0 0
    %670 = vmatprep.subr.bf16.mxu0 0
    %671 = vmatpush1.bf16.msra.mxu0 0
    %672 = vmatprep.subr.bf16.mxu0 0
    %673 = vmatpush1.bf16.msra.mxu0 0
    %674 = vmatprep.subr.bf16.mxu0 0
    %675 = vmatpush1.bf16.msra.mxu0 0
    %676 = vmatprep.subr.bf16.mxu0 0
    %677 = vmatpush1.bf16.msra.mxu0 0
    %678 = vmatprep.subr.bf16.mxu0 0
    %679 = vmatpush1.bf16.msra.mxu0 0
    %680 = vmatprep.subr.bf16.mxu0 0
    %681 = vmatpush1.bf16.msra.mxu0 0
    %682 = vmatprep.mubr.bf16.mxu0 0
    %683 = vmatmul.mubr.bf16.gmra.mrb[0].mxu0 %v648
    %v684 = vpop.f32.mrb[0].mxu0
    %v685 = vadd.f32 %v622, %v684
    %v686 = vpop.f32.mrb[0].mxu0
    %v687 = vpop.f32.mrb[0].mxu0
    %v688 = vadd.f32 %v622, %v687
    %v689 = vpop.f32.mrb[0].mxu0
    %690 = vdwg.mxu0
    %v691 = vadd.f32 %v553, %v685
    %v692 = vadd.f32 %v554, %v688
    %v693 = vsel %vm84, %v691, 0.0
    %694 = vadd.xlane.f32.xlu0 %v693
    %v695 = vpop.xlane.xlu0 %694
    %v696 = vsel %vm84, %v692, 0.0
    %697 = vadd.xlane.f32.xlu0 %v696
    %v698 = vpop.xlane.xlu0 %697
    %v699 = vmul.f32 %v695, %v522
    %v700 = vmul.f32 %v698, %v522
    %v701 = vsub.f32 %v691, %v699
    %v702 = vsub.f32 %v692, %v700
    %v703 = vmul.f32 %v701, %v701
    %v704 = vmul.f32 %v702, %v702
    %v705 = vsel %vm84, %v703, 0.0
    %706 = vadd.xlane.f32.xlu0 %v705
    %v707 = vpop.xlane.xlu0 %706
    %v708 = vsel %vm84, %v704, 0.0
    %709 = vadd.xlane.f32.xlu0 %v708
    %v710 = vpop.xlane.xlu0 %709
    %v711 = vmul.f32 %v707, %v522
    %v712 = vmul.f32 %v710, %v522
    %v713 = vadd.f32 %v711, 1e-05
    %v714 = vadd.f32 %v712, 1e-05
    %v715 = vrsqrt.pop %v713
    %v716 = vrsqrt.pop %v714
    %v717 = vmul.f32 %v701, %v715
    %v718 = vmul.f32 %v702, %v716
    %v719 = vlaneseq
    %v720 = vshrl.u32 %v719, 7
    %v721 = vsub.s32 6, %v720
    %v722 = vrot.slane %v46, %v721
    %v723 = vmul.f32 %v717, %v722
    %v724 = vmul.f32 %v718, %v722
    %v725 = vlaneseq
    %v726 = vshrl.u32 %v725, 7
    %v727 = vsub.s32 7, %v726
    %v728 = vrot.slane %v46, %v727
    %v729 = vadd.f32 %v723, %v728
    %v730 = vadd.f32 %v724, %v728
    %731 = vst.msk [vmem:[#allocation7] sm:$0xff] %vm84, %v729
    %732 = vst.msk [vmem:[#allocation7 + $0x8] sm:$0xff] %vm84, %v730
    // Predicated region
    $region22: #{encoder_block.1} parent=1 // pred_check
      _
    $region23: #{encoder_block.1} parent=1 // pred_check_branch
      %734 = sbr.rel (0) target = $region25
    $region24: #{encoder_block.1} parent=1 // pred_region
      %s736 = ssub.s32 256, 256
      %737 = vsyncadd [#allocation4], %s736
      %s738 = sshll.u32 [#allocation7], 4
      %s739 = int_to_ptr.vmem [resolvable:$true] %s738
      %744 = dma.vmem_to_hbm [thread:$0]  %s739, 256, %s3, [#allocation4], 128, 128, 8
    $region25: #{encoder_block.1} parent=1 // pred_fallthru
      _
    // Predicated region
    $region26: #{encoder_block.1} parent=1 // pred_check
      _
    $region27: #{encoder_block.1} parent=1 // pred_check_branch
      %746 = sbr.rel (0) target = $region29
    $region28: #{encoder_block.1} parent=1 // pred_region
      %747 = dma.done [#allocation4], 256
    $region29: #{encoder_block.1} parent=1 // pred_fallthru
      _
    %748 = vsyncpa [#allocation3], 1
    %749 = vsyncpa [#allocation6], 1
    %750 = vsyncpa [#allocation4], 1

</llo_original>
